<compile_context>
chip_gen: v7x
topology: tpu7x:2x2x1
jax: 0.10.0
libtpu: 0.0.40
codegen_flags: <defaults>
</compile_context>

<pallas_src>
import functools

import jax
import jax.numpy as jnp
import numpy as np
from jax import lax
from jax.experimental import pallas as pl
from jax.experimental.pallas import tpu as pltpu

MARGIN = 1.0
_LANE = 128
_SUB = 8
_NUM_CORES = 2  # v7x has 2 TensorCores per chip; harmless (serial) elsewhere.


def _round_up(x, m):
    return ((x + m - 1) // m) * m


def _contrastive_kernel(bi_ref, bj_ref,                      # scalar prefetch
                        emb_i_ref, emb_j_ref, lab_i_ref, lab_j_ref,
                        sq_i_ref, sq_j_ref,                  # inputs
                        out_ref,                             # per-core partial
                        *, margin, ti, tj, steps_per_core, n_real):
    c = pl.program_id(0)            # core split axis ("parallel")
    t = pl.program_id(1)            # triangular step axis ("arbitrary")
    idx = c * steps_per_core + t

    # The output block (1, 8, tj) is the per-core accumulator, resident in
    # VMEM across the whole t axis.
    @pl.when(t == 0)
    def _init():
        out_ref[...] = jnp.zeros_like(out_ref)

    bi = bi_ref[idx]
    bj = bj_ref[idx]

    @pl.when(idx < n_real)          # padded load-balancing steps do nothing
    def _compute():
        # Gram tile on the MXU: contract over D on BOTH operands (no .T).
        g = lax.dot_general(emb_i_ref[...], emb_j_ref[...],
                            (((1,), (1,)), ((), ())),
                            preferred_element_type=jnp.float32)      # (ti, tj)
        d2 = jnp.maximum(sq_i_ref[...] + sq_j_ref[...] - 2.0 * g, 0.0)
        same = lab_i_ref[...] == lab_j_ref[...]                      # (ti, tj)
        hinge = jnp.maximum(margin - jnp.sqrt(d2), 0.0)
        # Fused per-pair loss: positive -> d2, negative -> relu(m - dist)^2
        contrib = jnp.where(same, d2, hinge * hinge)

        def _accumulate(vals):
            # Partial-reduce the tile to a single (1, 8, tj) slab with VPU
            # vreg adds; the final cross-lane reduce happens in the wrapper.
            out_ref[...] += jnp.sum(vals.reshape(ti // _SUB, _SUB, tj),
                                    axis=0, keepdims=True)

        # Only tiles that straddle the diagonal pay for the iota mask.
        straddles = bj * tj < bi * ti + ti

        @pl.when(straddles)
        def _diag():
            r = bi * ti + lax.broadcasted_iota(jnp.int32, (ti, tj), 0)
            cg = bj * tj + lax.broadcasted_iota(jnp.int32, (ti, tj), 1)
            _accumulate(jnp.where(cg > r, contrib, 0.0))

        @pl.when(jnp.logical_not(straddles))
        def _full():
            _accumulate(contrib)


def online_contrastive_loss(embeddings, labels, margin=MARGIN,
                            tile_i=512, tile_j=256):
    """Mean contrastive loss over all i<j pairs (AllPositivePairSelector)."""
    n, d = embeddings.shape
    assert n >= 2, "need at least two embeddings to form a pair"

    d_pad = _round_up(d, _LANE)
    tile_j = _round_up(tile_j, _LANE)
    tile_i = _round_up(tile_i, tile_j)

    if n <= tile_j:
        # Tiny batch: a single (full) block on both axes.
        ti = tj = n_pad = _round_up(n, _SUB)
    else:
        tj = tile_j
        ti = min(tile_i, _round_up(n, tj))
        # VMEM-aware clamp: double-buffered row + col embedding tiles must fit
        # well under the v7x 64 MiB VMEM (limit capped at 48 MiB below).
        isz = np.dtype(embeddings.dtype).itemsize
        budget = 36 * 1024 * 1024
        while ti > tj and 2 * (ti + tj) * d_pad * isz > budget:
            ti //= 2
        ti = max(tj, (ti // tj) * tj)
        n_pad = _round_up(n, ti)

    pad = n_pad - n

    # Padded embeddings (kept in the input dtype; bf16 inputs stream bf16).
    emb_p = jnp.pad(embeddings, ((0, pad), (0, d_pad - d)))

    # Squared row norms precomputed once in f32.  Padded rows get a huge norm
    # so every padded<->anything pair is a "negative" pair whose distance is
    # far outside the margin -> exactly 0 contribution (no validity mask).
    emb_f32 = embeddings.astype(jnp.float32)
    sq = jnp.sum(emb_f32 * emb_f32, axis=1)
    big = jnp.float32(float(margin) * float(margin) + 1e6)
    sq_p = jnp.concatenate([sq, jnp.full((pad,), big, jnp.float32)])
    sq_col = sq_p.reshape(n_pad, 1)
    sq_row = sq_p.reshape(1, n_pad)

    # Distinct sentinel labels for padded rows: padded<->padded pairs are
    # "negative" (huge distance -> 0) instead of colliding with label 0.
    lab = labels.reshape(n).astype(jnp.int32)
    sent = jnp.max(lab) + 1 + jnp.arange(pad, dtype=jnp.int32)
    lab_p = jnp.concatenate([lab, sent])
    lab_col = lab_p.reshape(n_pad, 1)
    lab_row = lab_p.reshape(1, n_pad)

    # Static triangular tile enumeration (only tiles containing >=1 pair i<j),
    # ordered so the tall row tile changes rarely and the column tile streams.
    n_blk_i = n_pad // ti
    n_blk_j = n_pad // tj
    steps = [(bi, bj)
             for bi in range(n_blk_i)
             for bj in range(n_blk_j)
             if bj * tj + tj - 1 > bi * ti]
    n_real = len(steps)
    spc = -(-n_real // _NUM_CORES)          # steps per core (ceil)
    steps = steps + [steps[-1]] * (_NUM_CORES * spc - n_real)  # no re-DMA pad
    bi_tab = jnp.asarray(np.array([s[0] for s in steps], np.int32))
    bj_tab = jnp.asarray(np.array([s[1] for s in steps], np.int32))

    # Index maps: (core, step, *prefetch_refs) -> block indices.
    def row_map(c, t, bi_t, bj_t):
        return (bi_t[c * spc + t], 0)

    def col_map(c, t, bi_t, bj_t):
        return (bj_t[c * spc + t], 0)

    def row_vec_map(c, t, bi_t, bj_t):
        return (0, bj_t[c * spc + t])

    def out_map(c, t, bi_t, bj_t):
        return (c, 0, 0)

    kernel = functools.partial(_contrastive_kernel, margin=float(margin),
                               ti=ti, tj=tj, steps_per_core=spc, n_real=n_real)

    partials = pl.pallas_call(
        kernel,
        out_shape=jax.ShapeDtypeStruct((_NUM_CORES, _SUB, tj), jnp.float32),
        grid_spec=pltpu.PrefetchScalarGridSpec(
            num_scalar_prefetch=2,
            grid=(_NUM_CORES, spc),
            in_specs=[
                pl.BlockSpec((ti, d_pad), row_map),      # row embedding tile
                pl.BlockSpec((tj, d_pad), col_map),      # col embedding tile
                pl.BlockSpec((ti, 1), row_map),          # labels (column)
                pl.BlockSpec((1, tj), row_vec_map),      # labels (row)
                pl.BlockSpec((ti, 1), row_map),          # sq norms (column)
                pl.BlockSpec((1, tj), row_vec_map),      # sq norms (row)
            ],
            out_specs=pl.BlockSpec((1, _SUB, tj), out_map),
        ),
        compiler_params=pltpu.CompilerParams(
            # Core-split axis is independent (megacore on v7x); the triangular
            # step axis revisits the per-core accumulator -> "arbitrary".
            dimension_semantics=("parallel", "arbitrary"),
            vmem_limit_bytes=48 * 1024 * 1024,   # <= 64 MiB physical on v7x
        ),
    )(bi_tab, bj_tab, emb_p, emb_p, lab_col, lab_row, sq_col, sq_row)

    # Closed-form pair count: every unordered pair i<j is either pos or neg.
    count = n * (n - 1) // 2
    return jnp.sum(partials) / jnp.float32(count)


def _reference_loss(embeddings, labels, margin=MARGIN):
    """Vectorized numpy replica of the PyTorch forward (all pairs i<j)."""
    e = np.asarray(embeddings, dtype=np.float64)
    lab = np.asarray(labels)
    n = e.shape[0]
    sq = np.sum(e * e, axis=1)
    d2 = np.maximum(sq[:, None] + sq[None, :] - 2.0 * (e @ e.T), 0.0)
    iu = np.triu_indices(n, k=1)
    d2u = d2[iu]
    same = (lab[:, None] == lab[None, :])[iu]
    pos = d2u[same]
    neg = np.maximum(margin - np.sqrt(d2u[~same]), 0.0) ** 2
    return float(np.concatenate([pos, neg]).mean())


if __name__ == "__main__":
    key = jax.random.PRNGKey(0)
    k1, k2 = jax.random.split(key)

    # Small smoke test (single diagonal-masked tile).
    N, D = 8, 32
    embeddings = jax.random.normal(k1, (N, D), dtype=jnp.float32)
    labels = jnp.array([0, 0, 1, 1, 2, 2, 0, 1], dtype=jnp.int32)
    loss = jax.block_until_ready(
        online_contrastive_loss(embeddings, labels, margin=MARGIN))
    ref = _reference_loss(np.array(embeddings), np.array(labels), margin=MARGIN)
    assert np.allclose(float(loss), ref, rtol=1e-4, atol=1e-5), (float(loss), ref)

    # Larger check: triangular multi-tile grid, padding sentinels, unmasked
    # off-diagonal tiles, active hinge terms, and the 2-way core split.
    N2, D2 = 520, 96
    emb2 = 0.05 * jax.random.normal(k2, (N2, D2), dtype=jnp.float32)
    lab2 = jax.random.randint(k1, (N2,), 0, 7, dtype=jnp.int32)
    loss2 = jax.block_until_ready(
        online_contrastive_loss(emb2, lab2, margin=MARGIN))
    ref2 = _reference_loss(np.array(emb2), np.array(lab2), margin=MARGIN)
    assert np.allclose(float(loss2), ref2, rtol=5e-4, atol=1e-6), (float(loss2), ref2)

    print("KERNEL_OK")
</pallas_src>

<mosaic_0001>
module attributes {stable_mosaic.version = 11 : i64} {
  func.func @_contrastive_kernel(%arg0: i32, %arg1: i32, %arg2: memref<2xi32, #tpu.memory_space<smem>>, %arg3: memref<2xi32, #tpu.memory_space<smem>>, %arg4: memref<8x128xf32, #tpu.memory_space<vmem>>, %arg5: memref<8x128xf32, #tpu.memory_space<vmem>>, %arg6: memref<8x1xi32, #tpu.memory_space<vmem>>, %arg7: memref<1x8xi32, #tpu.memory_space<vmem>>, %arg8: memref<8x1xf32, #tpu.memory_space<vmem>>, %arg9: memref<1x8xf32, #tpu.memory_space<vmem>>, %arg10: memref<1x8x8xf32, #tpu.memory_space<vmem>>) attributes {dimension_semantics = [#tpu.dimension_semantics<parallel>, #tpu.dimension_semantics<arbitrary>], iteration_bounds = array<i64: 2, 1>, scalar_prefetch = 2 : i64, scratch_operands = 0 : i64, tpu.core_type = #tpu.core_type<tc>, window_params = [{transform_indices = @transform_0, window_bounds = array<i64: 8, 128>}, {transform_indices = @transform_1, window_bounds = array<i64: 8, 128>}, {transform_indices = @transform_2, window_bounds = array<i64: 8, 1>}, {transform_indices = @transform_3, window_bounds = array<i64: 1, 8>}, {transform_indices = @transform_4, window_bounds = array<i64: 8, 1>}, {transform_indices = @transform_5, window_bounds = array<i64: 1, 8>}, {transform_indices = @transform_6, window_bounds = array<i64: 1, 8, 8>}]} {
    %c1_i32 = arith.constant 1 : i32
    %0 = arith.muli %arg0, %c1_i32 : i32
    %1 = arith.addi %0, %arg1 : i32
    %c0_i32 = arith.constant 0 : i32
    %2 = arith.cmpi eq, %arg1, %c0_i32 : i32
    %3 = arith.extui %2 : i1 to i32
    %c0_i32_0 = arith.constant 0 : i32
    %4 = arith.cmpi ne, %3, %c0_i32_0 : i32
    scf.if %4 {
      %cst = arith.constant 0.000000e+00 : f32
      %12 = vector.broadcast %cst : f32 to vector<1x8x8xf32>
      %c0 = arith.constant 0 : index
      %c0_3 = arith.constant 0 : index
      %c0_4 = arith.constant 0 : index
      %13 = vector.load %arg10[%c0, %c0_3, %c0_4] : memref<1x8x8xf32, #tpu.memory_space<vmem>>, vector<1x8x8xf32>
      tpu.vector_store %arg10[%c0, %c0_3, %c0_4], %12 {strides = array<i32>} : memref<1x8x8xf32, #tpu.memory_space<vmem>>, vector<1x8x8xf32>,
    } else {
    }
    %5 = arith.index_cast %1 : i32 to index
    %6 = memref.load %arg2[%5] : memref<2xi32, #tpu.memory_space<smem>>
    %7 = arith.index_cast %1 : i32 to index
    %8 = memref.load %arg3[%7] : memref<2xi32, #tpu.memory_space<smem>>
    %c1_i32_1 = arith.constant 1 : i32
    %9 = arith.cmpi slt, %1, %c1_i32_1 : i32
    %10 = arith.extui %9 : i1 to i32
    %c0_i32_2 = arith.constant 0 : i32
    %11 = arith.cmpi ne, %10, %c0_i32_2 : i32
    scf.if %11 {
      %c0 = arith.constant 0 : index
      %c0_3 = arith.constant 0 : index
      %12 = vector.load %arg4[%c0, %c0_3] : memref<8x128xf32, #tpu.memory_space<vmem>>, vector<8x128xf32>
      %c0_4 = arith.constant 0 : index
      %c0_5 = arith.constant 0 : index
      %13 = vector.load %arg5[%c0_4, %c0_5] : memref<8x128xf32, #tpu.memory_space<vmem>>, vector<8x128xf32>
      %cst = arith.constant dense<0.000000e+00> : vector<8x8xf32>
      %14 = tpu.matmul %12, %13, %cst {dimension_numbers = #tpu.dot_dimension_numbers<[1], [1], [0], [0], [0, 0, 1, 0], [], []>} : vector<8x128xf32>, vector<8x128xf32>, vector<8x8xf32> -> vector<8x8xf32>
      %c0_6 = arith.constant 0 : index
      %c0_7 = arith.constant 0 : index
      %15 = vector.load %arg8[%c0_6, %c0_7] : memref<8x1xf32, #tpu.memory_space<vmem>>, vector<8x1xf32>
      %c0_8 = arith.constant 0 : index
      %c0_9 = arith.constant 0 : index
      %16 = vector.load %arg9[%c0_8, %c0_9] : memref<1x8xf32, #tpu.memory_space<vmem>>, vector<1x8xf32>
      %17 = vector.broadcast %15 : vector<8x1xf32> to vector<8x8xf32>
      %18 = vector.broadcast %16 : vector<1x8xf32> to vector<8x8xf32>
      %19 = arith.addf %17, %18 : vector<8x8xf32>
      %cst_10 = arith.constant 2.000000e+00 : f32
      %20 = vector.broadcast %cst_10 : f32 to vector<8x8xf32>
      %21 = arith.mulf %20, %14 : vector<8x8xf32>
      %22 = arith.subf %19, %21 : vector<8x8xf32>
      %cst_11 = arith.constant 0.000000e+00 : f32
      %23 = vector.broadcast %cst_11 : f32 to vector<8x8xf32>
      %24 = arith.maximumf %22, %23 : vector<8x8xf32>
      %c0_12 = arith.constant 0 : index
      %c0_13 = arith.constant 0 : index
      %25 = vector.load %arg6[%c0_12, %c0_13] : memref<8x1xi32, #tpu.memory_space<vmem>>, vector<8x1xi32>
      %c0_14 = arith.constant 0 : index
      %c0_15 = arith.constant 0 : index
      %26 = vector.load %arg7[%c0_14, %c0_15] : memref<1x8xi32, #tpu.memory_space<vmem>>, vector<1x8xi32>
      %27 = vector.broadcast %25 : vector<8x1xi32> to vector<8x8xi32>
      %28 = vector.broadcast %26 : vector<1x8xi32> to vector<8x8xi32>
      %29 = arith.cmpi eq, %27, %28 : vector<8x8xi32>
      %30 = math.sqrt %24 : vector<8x8xf32>
      %cst_16 = arith.constant 1.000000e+00 : f32
      %31 = vector.broadcast %cst_16 : f32 to vector<8x8xf32>
      %32 = arith.subf %31, %30 : vector<8x8xf32>
      %cst_17 = arith.constant 0.000000e+00 : f32
      %33 = vector.broadcast %cst_17 : f32 to vector<8x8xf32>
      %34 = arith.maximumf %32, %33 : vector<8x8xf32>
      %35 = arith.mulf %34, %34 : vector<8x8xf32>
      %36 = arith.select %29, %24, %35 : vector<8x8xi1>, vector<8x8xf32>
      %c8_i32 = arith.constant 8 : i32
      %37 = arith.muli %8, %c8_i32 : i32
      %c8_i32_18 = arith.constant 8 : i32
      %38 = arith.muli %6, %c8_i32_18 : i32
      %c8_i32_19 = arith.constant 8 : i32
      %39 = arith.addi %38, %c8_i32_19 : i32
      %40 = arith.cmpi slt, %37, %39 : i32
      %41 = arith.extui %40 : i1 to i32
      %c0_i32_20 = arith.constant 0 : i32
      %42 = arith.cmpi ne, %41, %c0_i32_20 : i32
      scf.if %42 {
        %c8_i32_22 = arith.constant 8 : i32
        %46 = arith.muli %6, %c8_i32_22 : i32
        %47 = tpu.iota {dimensions = array<i32: 0>} : vector<8x8xi32>
        %48 = vector.broadcast %46 : i32 to vector<8x8xi32>
        %49 = arith.addi %48, %47 : vector<8x8xi32>
        %c8_i32_23 = arith.constant 8 : i32
        %50 = arith.muli %8, %c8_i32_23 : i32
        %51 = tpu.iota {dimensions = array<i32: 1>} : vector<8x8xi32>
        %52 = vector.broadcast %50 : i32 to vector<8x8xi32>
        %53 = arith.addi %52, %51 : vector<8x8xi32>
        %54 = arith.cmpi sgt, %53, %49 : vector<8x8xi32>
        %cst_24 = arith.constant 0.000000e+00 : f32
        %55 = vector.broadcast %cst_24 : f32 to vector<8x8xf32>
        %56 = arith.select %54, %36, %55 : vector<8x8xi1>, vector<8x8xf32>
        %c0_25 = arith.constant 0 : index
        %c0_26 = arith.constant 0 : index
        %c0_27 = arith.constant 0 : index
        %57 = vector.load %arg10[%c0_25, %c0_26, %c0_27] : memref<1x8x8xf32, #tpu.memory_space<vmem>>, vector<1x8x8xf32>
        %58 = vector.shape_cast %56 : vector<8x8xf32> to vector<1x8x8xf32>
        %cst_28 = arith.constant dense<0.000000e+00> : vector<8x8xf32>
        %59 = vector.multi_reduction <add>, %58, %cst_28 [0] : vector<1x8x8xf32> to vector<8x8xf32>
        %60 = vector.shape_cast %59 : vector<8x8xf32> to vector<1x8x8xf32>
        %61 = arith.addf %57, %60 : vector<1x8x8xf32>
        %c0_29 = arith.constant 0 : index
        %c0_30 = arith.constant 0 : index
        %c0_31 = arith.constant 0 : index
        %62 = vector.load %arg10[%c0_29, %c0_30, %c0_31] : memref<1x8x8xf32, #tpu.memory_space<vmem>>, vector<1x8x8xf32>
        tpu.vector_store %arg10[%c0_29, %c0_30, %c0_31], %61 {strides = array<i32>} : memref<1x8x8xf32, #tpu.memory_space<vmem>>, vector<1x8x8xf32>,
      } else {
      }
      %true = arith.constant true
      %43 = arith.xori %40, %true : i1
      %44 = arith.extui %43 : i1 to i32
      %c0_i32_21 = arith.constant 0 : i32
      %45 = arith.cmpi ne, %44, %c0_i32_21 : i32
      scf.if %45 {
        %c0_22 = arith.constant 0 : index
        %c0_23 = arith.constant 0 : index
        %c0_24 = arith.constant 0 : index
        %46 = vector.load %arg10[%c0_22, %c0_23, %c0_24] : memref<1x8x8xf32, #tpu.memory_space<vmem>>, vector<1x8x8xf32>
        %47 = vector.shape_cast %36 : vector<8x8xf32> to vector<1x8x8xf32>
        %cst_25 = arith.constant dense<0.000000e+00> : vector<8x8xf32>
        %48 = vector.multi_reduction <add>, %47, %cst_25 [0] : vector<1x8x8xf32> to vector<8x8xf32>
        %49 = vector.shape_cast %48 : vector<8x8xf32> to vector<1x8x8xf32>
        %50 = arith.addf %46, %49 : vector<1x8x8xf32>
        %c0_26 = arith.constant 0 : index
        %c0_27 = arith.constant 0 : index
        %c0_28 = arith.constant 0 : index
        %51 = vector.load %arg10[%c0_26, %c0_27, %c0_28] : memref<1x8x8xf32, #tpu.memory_space<vmem>>, vector<1x8x8xf32>
        tpu.vector_store %arg10[%c0_26, %c0_27, %c0_28], %50 {strides = array<i32>} : memref<1x8x8xf32, #tpu.memory_space<vmem>>, vector<1x8x8xf32>,
      } else {
      }
    } else {
    }
    return
  }
  func.func @transform_0(%arg0: i32, %arg1: i32, %arg2: memref<2xi32, #tpu.memory_space<smem>>, %arg3: memref<2xi32, #tpu.memory_space<smem>>) -> (i32, i32) {
    %c1_i32 = arith.constant 1 : i32
    %0 = arith.muli %arg0, %c1_i32 : i32
    %1 = arith.addi %0, %arg1 : i32
    %2 = arith.index_cast %1 : i32 to index
    %3 = memref.load %arg2[%2] : memref<2xi32, #tpu.memory_space<smem>>
    %c0_i32 = arith.constant 0 : i32
    %c0_i32_0 = arith.constant 0 : i32
    return %3, %c0_i32 : i32, i32
  }
  func.func @transform_1(%arg0: i32, %arg1: i32, %arg2: memref<2xi32, #tpu.memory_space<smem>>, %arg3: memref<2xi32, #tpu.memory_space<smem>>) -> (i32, i32) {
    %c1_i32 = arith.constant 1 : i32
    %0 = arith.muli %arg0, %c1_i32 : i32
    %1 = arith.addi %0, %arg1 : i32
    %2 = arith.index_cast %1 : i32 to index
    %3 = memref.load %arg3[%2] : memref<2xi32, #tpu.memory_space<smem>>
    %c0_i32 = arith.constant 0 : i32
    %c0_i32_0 = arith.constant 0 : i32
    return %3, %c0_i32 : i32, i32
  }
  func.func @transform_2(%arg0: i32, %arg1: i32, %arg2: memref<2xi32, #tpu.memory_space<smem>>, %arg3: memref<2xi32, #tpu.memory_space<smem>>) -> (i32, i32) {
    %c1_i32 = arith.constant 1 : i32
    %0 = arith.muli %arg0, %c1_i32 : i32
    %1 = arith.addi %0, %arg1 : i32
    %2 = arith.index_cast %1 : i32 to index
    %3 = memref.load %arg2[%2] : memref<2xi32, #tpu.memory_space<smem>>
    %c0_i32 = arith.constant 0 : i32
    %c0_i32_0 = arith.constant 0 : i32
    return %3, %c0_i32 : i32, i32
  }
  func.func @transform_3(%arg0: i32, %arg1: i32, %arg2: memref<2xi32, #tpu.memory_space<smem>>, %arg3: memref<2xi32, #tpu.memory_space<smem>>) -> (i32, i32) {
    %c1_i32 = arith.constant 1 : i32
    %0 = arith.muli %arg0, %c1_i32 : i32
    %1 = arith.addi %0, %arg1 : i32
    %2 = arith.index_cast %1 : i32 to index
    %3 = memref.load %arg3[%2] : memref<2xi32, #tpu.memory_space<smem>>
    %c0_i32 = arith.constant 0 : i32
    %c0_i32_0 = arith.constant 0 : i32
    return %c0_i32, %3 : i32, i32
  }
  func.func @transform_4(%arg0: i32, %arg1: i32, %arg2: memref<2xi32, #tpu.memory_space<smem>>, %arg3: memref<2xi32, #tpu.memory_space<smem>>) -> (i32, i32) {
    %c1_i32 = arith.constant 1 : i32
    %0 = arith.muli %arg0, %c1_i32 : i32
    %1 = arith.addi %0, %arg1 : i32
    %2 = arith.index_cast %1 : i32 to index
    %3 = memref.load %arg2[%2] : memref<2xi32, #tpu.memory_space<smem>>
    %c0_i32 = arith.constant 0 : i32
    %c0_i32_0 = arith.constant 0 : i32
    return %3, %c0_i32 : i32, i32
  }
  func.func @transform_5(%arg0: i32, %arg1: i32, %arg2: memref<2xi32, #tpu.memory_space<smem>>, %arg3: memref<2xi32, #tpu.memory_space<smem>>) -> (i32, i32) {
    %c1_i32 = arith.constant 1 : i32
    %0 = arith.muli %arg0, %c1_i32 : i32
    %1 = arith.addi %0, %arg1 : i32
    %2 = arith.index_cast %1 : i32 to index
    %3 = memref.load %arg3[%2] : memref<2xi32, #tpu.memory_space<smem>>
    %c0_i32 = arith.constant 0 : i32
    %c0_i32_0 = arith.constant 0 : i32
    return %c0_i32, %3 : i32, i32
  }
  func.func @transform_6(%arg0: i32, %arg1: i32, %arg2: memref<2xi32, #tpu.memory_space<smem>>, %arg3: memref<2xi32, #tpu.memory_space<smem>>) -> (i32, i32, i32) {
    %c0_i32 = arith.constant 0 : i32
    %c0_i32_0 = arith.constant 0 : i32
    %c0_i32_1 = arith.constant 0 : i32
    return %arg0, %c0_i32, %c0_i32_0 : i32, i32, i32
  }
}

</mosaic_0001>

<llo_original>
// kernel: tpu_custom_call.1
$region0: #{tpu_custom_call.1}
  #allocation0 [shape = 'u32[]', space=smem, size = 0x4, offset = 0x4, fixed_abs, tag = 'smem constant byte address 0x4 - core index']
  #allocation1 [shape = 'u32[144,128]{1,0:T(1,128)}', space=vmem, size = 0x12000, scoped, tag = 'internal scratch']
  #allocation2 [shape = 's32[1]{0}', space=sflag, size = 0x4, scoped, tag = 'scoped memory for tpu_custom_call.1']
  #allocation3 [shape = 'u8[512]{0}', space=smem, size = 0x200, scoped, tag = 'prefetched SMEM operand 0']
  #allocation4 [shape = 'u8[512]{0}', space=smem, size = 0x200, scoped, tag = 'prefetched SMEM operand 1']
  %s0 = inlined_call_operand.vmem [shape: s32[2], index: 0, kind: input, shape index: {}]
  %s1 = inlined_call_operand.vmem [shape: s32[2], index: 1, kind: input, shape index: {}]
  %s2 = inlined_call_operand.vmem [shape: f32[8,128], index: 2, kind: input, shape index: {}]
  %s3 = inlined_call_operand.vmem [shape: f32[8,128], index: 3, kind: input, shape index: {}]
  %s4 = inlined_call_operand.vmem [shape: s32[8,1], index: 4, kind: input, shape index: {}]
  %s5 = inlined_call_operand.vmem [shape: s32[1,8], index: 5, kind: input, shape index: {}]
  %s6 = inlined_call_operand.vmem [shape: f32[8,1], index: 6, kind: input, shape index: {}]
  %s7 = inlined_call_operand.vmem [shape: f32[1,8], index: 7, kind: input, shape index: {}]
  %s8 = inlined_call_operand.hbm [shape: f32[2,8,8], index: 8, kind: output, shape index: {}]
  %s9 = sld [smem:[#allocation0]]
  $region73: #{tpu_custom_call.1} parent=0
    _
  %s11 = ssub.s32 1, %s9
  %s12 = scalar_select 0, %s11, %s9
  %s13 = sshll.u32 %s0, 4
  %s14 = int_to_ptr.vmem [resolvable:$true] %s13
  %16 = dma.vmem_to_smem %s14, 16, [#allocation3], [#allocation2]
  %s17 = sshll.u32 %s1, 4
  %s18 = int_to_ptr.vmem [resolvable:$true] %s17
  %20 = dma.vmem_to_smem %s18, 16, [#allocation4], [#allocation2]
  %21 = dma.done [#allocation2], 32
  %22 = sfence
  $region1: #{tpu_custom_call.1} parent=0
    #allocation5 [shape = 'u8[8192]{0}', space=vmem, size = 0x2000, scoped, tag = 'output window, operand 0']
    #allocation6 [shape = 's32[2]{0}', space=sflag, size = 0x8, scoped, tag = 'scoped memory for tpu_custom_call.1']
    %23 = vsyncpa [#allocation6], 0
    %s24 = scalar_lea.sflag [#allocation6], 1
    %25 = vsyncpa %s24, 0
    loop: start=0, step=1, limit=4
    $region2: #{tpu_custom_call.1} parent=1 // loop_pre_header
      _
    $region3: #{tpu_custom_call.1} parent=1 // loop_header
      %s27 = sphi 0, %s31
      %p28 = scmp.ge.s32.totalorder %s27, 4
      %s34 = sphi 0, %s46
      %s35 = sphi 0, %s42
      %s36 = sphi 0, %s34
      %s37 = sphi 0, %s35
      %s38 = sphi 0, %s36
      %s39 = sphi 0, %s37
      %s53 = sphi 0, %s55
      %s56 = sphi 0, %s53
      %s57 = sphi 0, %s56
      %s73 = sphi 0, %s57
      %s83 = sphi 0, %s85
      %s86 = sphi 0, %s83
      %s87 = sphi 0, %s86
      %s103 = sphi 0, %s87
      %s113 = sphi 0, %s115
      %s116 = sphi 0, %s113
      %s117 = sphi 0, %s116
      %s133 = sphi 0, %s117
      %s143 = sphi 0, %s145
      %s146 = sphi 0, %s143
      %s147 = sphi 0, %s146
      %s163 = sphi 0, %s147
      %s173 = sphi 0, %s175
      %s176 = sphi 0, %s173
      %s177 = sphi 0, %s176
      %s193 = sphi 0, %s177
      %s203 = sphi 0, %s205
      %s206 = sphi 0, %s203
      %s207 = sphi 0, %s206
      %s223 = sphi 0, %s207
      %s229 = sphi 0, %s231
      %s232 = sphi 0, %s229
      %s233 = sphi 0, %s232
      %s249 = sphi 0, %s233
    $region4: #{tpu_custom_call.1} parent=1 // loop_header_branch
      %30 = sbr.rel (%p28) target = $region8
    $region5: #{tpu_custom_call.1} parent=1 // loop_body
      %s32 = ssub.s32 %s27, 1
      %s33 = ssub.s32 %s27, 2
      %s40 = sadd.s32 1, %s35
      %p41 = scmp.ge.s32.totalorder %s40, 1
      %s42 = scalar_select %p41, 0, %s40
      %s43 = sadd.s32 1, %s34
      %s44 = scalar_select %p41, %s43, %s34
      %p45 = scmp.ge.s32.totalorder %s44, 2
      %s46 = scalar_select %p45, 0, %s44
      %s47 = sadd.s32 %s34, %s35
      %s48 = sld [smem:[#allocation3 + %s47]]
      %s49 = sadd.s32 %s46, %s42
      %s50 = sld [smem:[#allocation3 + %s49]]
      %s51 = ssub.s32 %s48, %s50
      %p52 = scmp.eq.s32.totalorder %s51, 0
      %s54 = sadd.s32 %s53, 1
      %s55 = scalar_select %p52, %s53, %s54
      %p58 = pneg %p52
      %p59 = scmp.eq.s32.totalorder %s27, 1
      %p60 = por %p58, %p59
      %p61 = scmp.ne.s32.totalorder %s53, %s56
      %p62 = scmp.eq.s32.totalorder %s27, 0
      %p63 = por %p61, %p62
      %p64 = scmp.ne.s32.totalorder %s53, %s56
      %p65 = scmp.eq.s32.totalorder %s32, 1
      %p66 = por %p64, %p65
      %p67 = scmp.ne.s32.totalorder %s56, %s57
      %p68 = scmp.eq.s32.totalorder %s32, 0
      %p69 = por %p67, %p68
      %p70 = scmp.ne.s32.totalorder %s56, %s57
      %p71 = scmp.eq.s32.totalorder %s33, 1
      %p72 = por %p70, %p71
      %p74 = scmp.ne.s32.totalorder %s57, %s73
      %p75 = scmp.eq.s32.totalorder %s33, 0
      %p76 = por %p74, %p75
      %s77 = sadd.s32 %s34, %s35
      %s78 = sld [smem:[#allocation4 + %s77]]
      %s79 = sadd.s32 %s46, %s42
      %s80 = sld [smem:[#allocation4 + %s79]]
      %s81 = ssub.s32 %s78, %s80
      %p82 = scmp.eq.s32.totalorder %s81, 0
      %s84 = sadd.s32 %s83, 1
      %s85 = scalar_select %p82, %s83, %s84
      %p88 = pneg %p82
      %p89 = scmp.eq.s32.totalorder %s27, 1
      %p90 = por %p88, %p89
      %p91 = scmp.ne.s32.totalorder %s83, %s86
      %p92 = scmp.eq.s32.totalorder %s27, 0
      %p93 = por %p91, %p92
      %p94 = scmp.ne.s32.totalorder %s83, %s86
      %p95 = scmp.eq.s32.totalorder %s32, 1
      %p96 = por %p94, %p95
      %p97 = scmp.ne.s32.totalorder %s86, %s87
      %p98 = scmp.eq.s32.totalorder %s32, 0
      %p99 = por %p97, %p98
      %p100 = scmp.ne.s32.totalorder %s86, %s87
      %p101 = scmp.eq.s32.totalorder %s33, 1
      %p102 = por %p100, %p101
      %p104 = scmp.ne.s32.totalorder %s87, %s103
      %p105 = scmp.eq.s32.totalorder %s33, 0
      %p106 = por %p104, %p105
      %s107 = sadd.s32 %s34, %s35
      %s108 = sld [smem:[#allocation3 + %s107]]
      %s109 = sadd.s32 %s46, %s42
      %s110 = sld [smem:[#allocation3 + %s109]]
      %s111 = ssub.s32 %s108, %s110
      %p112 = scmp.eq.s32.totalorder %s111, 0
      %s114 = sadd.s32 %s113, 1
      %s115 = scalar_select %p112, %s113, %s114
      %p118 = pneg %p112
      %p119 = scmp.eq.s32.totalorder %s27, 1
      %p120 = por %p118, %p119
      %p121 = scmp.ne.s32.totalorder %s113, %s116
      %p122 = scmp.eq.s32.totalorder %s27, 0
      %p123 = por %p121, %p122
      %p124 = scmp.ne.s32.totalorder %s113, %s116
      %p125 = scmp.eq.s32.totalorder %s32, 1
      %p126 = por %p124, %p125
      %p127 = scmp.ne.s32.totalorder %s116, %s117
      %p128 = scmp.eq.s32.totalorder %s32, 0
      %p129 = por %p127, %p128
      %p130 = scmp.ne.s32.totalorder %s116, %s117
      %p131 = scmp.eq.s32.totalorder %s33, 1
      %p132 = por %p130, %p131
      %p134 = scmp.ne.s32.totalorder %s117, %s133
      %p135 = scmp.eq.s32.totalorder %s33, 0
      %p136 = por %p134, %p135
      %s137 = sadd.s32 %s34, %s35
      %s138 = sld [smem:[#allocation4 + %s137]]
      %s139 = sadd.s32 %s46, %s42
      %s140 = sld [smem:[#allocation4 + %s139]]
      %s141 = ssub.s32 %s138, %s140
      %p142 = scmp.eq.s32.totalorder %s141, 0
      %s144 = sadd.s32 %s143, 1
      %s145 = scalar_select %p142, %s143, %s144
      %p148 = pneg %p142
      %p149 = scmp.eq.s32.totalorder %s27, 1
      %p150 = por %p148, %p149
      %p151 = scmp.ne.s32.totalorder %s143, %s146
      %p152 = scmp.eq.s32.totalorder %s27, 0
      %p153 = por %p151, %p152
      %p154 = scmp.ne.s32.totalorder %s143, %s146
      %p155 = scmp.eq.s32.totalorder %s32, 1
      %p156 = por %p154, %p155
      %p157 = scmp.ne.s32.totalorder %s146, %s147
      %p158 = scmp.eq.s32.totalorder %s32, 0
      %p159 = por %p157, %p158
      %p160 = scmp.ne.s32.totalorder %s146, %s147
      %p161 = scmp.eq.s32.totalorder %s33, 1
      %p162 = por %p160, %p161
      %p164 = scmp.ne.s32.totalorder %s147, %s163
      %p165 = scmp.eq.s32.totalorder %s33, 0
      %p166 = por %p164, %p165
      %s167 = sadd.s32 %s34, %s35
      %s168 = sld [smem:[#allocation3 + %s167]]
      %s169 = sadd.s32 %s46, %s42
      %s170 = sld [smem:[#allocation3 + %s169]]
      %s171 = ssub.s32 %s168, %s170
      %p172 = scmp.eq.s32.totalorder %s171, 0
      %s174 = sadd.s32 %s173, 1
      %s175 = scalar_select %p172, %s173, %s174
      %p178 = pneg %p172
      %p179 = scmp.eq.s32.totalorder %s27, 1
      %p180 = por %p178, %p179
      %p181 = scmp.ne.s32.totalorder %s173, %s176
      %p182 = scmp.eq.s32.totalorder %s27, 0
      %p183 = por %p181, %p182
      %p184 = scmp.ne.s32.totalorder %s173, %s176
      %p185 = scmp.eq.s32.totalorder %s32, 1
      %p186 = por %p184, %p185
      %p187 = scmp.ne.s32.totalorder %s176, %s177
      %p188 = scmp.eq.s32.totalorder %s32, 0
      %p189 = por %p187, %p188
      %p190 = scmp.ne.s32.totalorder %s176, %s177
      %p191 = scmp.eq.s32.totalorder %s33, 1
      %p192 = por %p190, %p191
      %p194 = scmp.ne.s32.totalorder %s177, %s193
      %p195 = scmp.eq.s32.totalorder %s33, 0
      %p196 = por %p194, %p195
      %s197 = sadd.s32 %s34, %s35
      %s198 = sld [smem:[#allocation4 + %s197]]
      %s199 = sadd.s32 %s46, %s42
      %s200 = sld [smem:[#allocation4 + %s199]]
      %s201 = ssub.s32 %s198, %s200
      %p202 = scmp.eq.s32.totalorder %s201, 0
      %s204 = sadd.s32 %s203, 1
      %s205 = scalar_select %p202, %s203, %s204
      %p208 = pneg %p202
      %p209 = scmp.eq.s32.totalorder %s27, 1
      %p210 = por %p208, %p209
      %p211 = scmp.ne.s32.totalorder %s203, %s206
      %p212 = scmp.eq.s32.totalorder %s27, 0
      %p213 = por %p211, %p212
      %p214 = scmp.ne.s32.totalorder %s203, %s206
      %p215 = scmp.eq.s32.totalorder %s32, 1
      %p216 = por %p214, %p215
      %p217 = scmp.ne.s32.totalorder %s206, %s207
      %p218 = scmp.eq.s32.totalorder %s32, 0
      %p219 = por %p217, %p218
      %p220 = scmp.ne.s32.totalorder %s206, %s207
      %p221 = scmp.eq.s32.totalorder %s33, 1
      %p222 = por %p220, %p221
      %p224 = scmp.ne.s32.totalorder %s207, %s223
      %p225 = scmp.eq.s32.totalorder %s33, 0
      %p226 = por %p224, %p225
      %s227 = ssub.s32 %s34, %s46
      %p228 = scmp.eq.s32.totalorder %s227, 0
      %s230 = sadd.s32 %s229, 1
      %s231 = scalar_select %p228, %s229, %s230
      %p234 = pneg %p228
      %p235 = scmp.eq.s32.totalorder %s27, 1
      %p236 = por %p234, %p235
      %p237 = scmp.ne.s32.totalorder %s229, %s232
      %p238 = scmp.eq.s32.totalorder %s27, 0
      %p239 = por %p237, %p238
      %p240 = scmp.ne.s32.totalorder %s229, %s232
      %p241 = scmp.eq.s32.totalorder %s32, 1
      %p242 = por %p240, %p241
      %p243 = scmp.ne.s32.totalorder %s232, %s233
      %p244 = scmp.eq.s32.totalorder %s32, 0
      %p245 = por %p243, %p244
      %p246 = scmp.ne.s32.totalorder %s232, %s233
      %p247 = scmp.eq.s32.totalorder %s33, 1
      %p248 = por %p246, %p247
      %p250 = scmp.ne.s32.totalorder %s233, %s249
      %p251 = scmp.eq.s32.totalorder %s33, 0
      %p252 = por %p250, %p251
      %p253 = scmp.le.s32.totalorder 1, %s27
      %p254 = scmp.lt.s32.totalorder %s27, 3
      %p255 = pnand %p253, %p254
      %p256 = pneg %p255
      // Predicated region
      $region9: #{tpu_custom_call.1} parent=5 // pred_check
        _
      $region10: #{tpu_custom_call.1} parent=5 // pred_check_branch
        %258 = sbr.rel (%p255) target = $region12
      $region11: #{tpu_custom_call.1} parent=5 // pred_region
        %s259 = ssub.s32 %s27, 1
      $region12: #{tpu_custom_call.1} parent=5 // pred_fallthru
        _
      %p260 = scmp.lt.s32.totalorder %s27, 2
      // Predicated region
      $region13: #{tpu_custom_call.1} parent=5 // pred_check
        %p261 = pneg %p260
      $region14: #{tpu_custom_call.1} parent=5 // pred_check_branch
        %263 = sbr.rel (%p261) target = $region16
      $region15: #{tpu_custom_call.1} parent=5 // pred_region
        // Predicated region
        $region17: #{tpu_custom_call.1} parent=15 // pred_check
          %p264 = pneg %p63
        $region18: #{tpu_custom_call.1} parent=15 // pred_check_branch
          %266 = sbr.rel (%p264) target = $region20
        $region19: #{tpu_custom_call.1} parent=15 // pred_region
          %s267 = sadd.s32 %s34, %s35
          %s268 = sld [smem:[#allocation3 + %s267]]
          %p269 = scmp.lt.s32.totalorder %s268, 0
          %s270 = scalar_select %p269, %s268, 0
          %s271 = smul.addr %s270, 8
          %s272 = scalar_lea.vmem %s2, %s271
          %s273 = sadd.s32 %s34, %s35
          %s274 = sld [smem:[#allocation3 + %s273]]
        $region20: #{tpu_custom_call.1} parent=15 // pred_fallthru
          _
        // Predicated region
        $region21: #{tpu_custom_call.1} parent=15 // pred_check
          %p275 = pneg %p93
        $region22: #{tpu_custom_call.1} parent=15 // pred_check_branch
          %277 = sbr.rel (%p275) target = $region24
        $region23: #{tpu_custom_call.1} parent=15 // pred_region
          %s278 = sadd.s32 %s34, %s35
          %s279 = sld [smem:[#allocation4 + %s278]]
          %p280 = scmp.lt.s32.totalorder %s279, 0
          %s281 = scalar_select %p280, %s279, 0
          %s282 = smul.addr %s281, 8
          %s283 = scalar_lea.vmem %s3, %s282
          %s284 = sadd.s32 %s34, %s35
          %s285 = sld [smem:[#allocation4 + %s284]]
        $region24: #{tpu_custom_call.1} parent=15 // pred_fallthru
          _
        // Predicated region
        $region25: #{tpu_custom_call.1} parent=15 // pred_check
          %p286 = pneg %p123
        $region26: #{tpu_custom_call.1} parent=15 // pred_check_branch
          %288 = sbr.rel (%p286) target = $region28
        $region27: #{tpu_custom_call.1} parent=15 // pred_region
          %s289 = sadd.s32 %s34, %s35
          %s290 = sld [smem:[#allocation3 + %s289]]
          %p291 = scmp.lt.s32.totalorder %s290, 0
          %s292 = scalar_select %p291, %s290, 0
          %s293 = smul.addr %s292, 8
          %s294 = scalar_lea.vmem %s4, %s293
          %s295 = sadd.s32 %s34, %s35
          %s296 = sld [smem:[#allocation3 + %s295]]
        $region28: #{tpu_custom_call.1} parent=15 // pred_fallthru
          _
        // Predicated region
        $region29: #{tpu_custom_call.1} parent=15 // pred_check
          %p297 = pneg %p153
        $region30: #{tpu_custom_call.1} parent=15 // pred_check_branch
          %299 = sbr.rel (%p297) target = $region32
        $region31: #{tpu_custom_call.1} parent=15 // pred_region
          %s300 = sadd.s32 %s34, %s35
          %s301 = sld [smem:[#allocation4 + %s300]]
          %p302 = scmp.lt.s32.totalorder %s301, 0
          %s303 = scalar_select %p302, %s301, 0
          %s304 = scalar_lea.vmem %s5, %s303
          %s305 = sadd.s32 %s34, %s35
          %s306 = sld [smem:[#allocation4 + %s305]]
        $region32: #{tpu_custom_call.1} parent=15 // pred_fallthru
          _
        // Predicated region
        $region33: #{tpu_custom_call.1} parent=15 // pred_check
          %p307 = pneg %p183
        $region34: #{tpu_custom_call.1} parent=15 // pred_check_branch
          %309 = sbr.rel (%p307) target = $region36
        $region35: #{tpu_custom_call.1} parent=15 // pred_region
          %s310 = sadd.s32 %s34, %s35
          %s311 = sld [smem:[#allocation3 + %s310]]
          %p312 = scmp.lt.s32.totalorder %s311, 0
          %s313 = scalar_select %p312, %s311, 0
          %s314 = smul.addr %s313, 8
          %s315 = scalar_lea.vmem %s6, %s314
          %s316 = sadd.s32 %s34, %s35
          %s317 = sld [smem:[#allocation3 + %s316]]
        $region36: #{tpu_custom_call.1} parent=15 // pred_fallthru
          _
        // Predicated region
        $region37: #{tpu_custom_call.1} parent=15 // pred_check
          %p318 = pneg %p213
        $region38: #{tpu_custom_call.1} parent=15 // pred_check_branch
          %320 = sbr.rel (%p318) target = $region40
        $region39: #{tpu_custom_call.1} parent=15 // pred_region
          %s321 = sadd.s32 %s34, %s35
          %s322 = sld [smem:[#allocation4 + %s321]]
          %p323 = scmp.lt.s32.totalorder %s322, 0
          %s324 = scalar_select %p323, %s322, 0
          %s325 = scalar_lea.vmem %s7, %s324
          %s326 = sadd.s32 %s34, %s35
          %s327 = sld [smem:[#allocation4 + %s326]]
        $region40: #{tpu_custom_call.1} parent=15 // pred_fallthru
          _
      $region16: #{tpu_custom_call.1} parent=5 // pred_fallthru
        _
      %p328 = scmp.le.s32.totalorder 1, %s27
      %p329 = scmp.lt.s32.totalorder %s27, 3
      %p330 = pnand %p328, %p329
      %p331 = pneg %p330
      // Predicated region
      $region41: #{tpu_custom_call.1} parent=5 // pred_check
        _
      $region42: #{tpu_custom_call.1} parent=5 // pred_check_branch
        %333 = sbr.rel (%p330) target = $region44
      $region43: #{tpu_custom_call.1} parent=5 // pred_region
        %s334 = ssub.s32 %s27, 1
        %s335 = sadd.s32 %s36, %s37
        %s336 = sld [smem:[#allocation3 + %s335]]
        %p337 = scmp.lt.s32.totalorder %s336, 0
        %s338 = scalar_select %p337, %s336, 0
        %s339 = smul.addr %s338, 8
        %s340 = scalar_lea.vmem %s2, %s339
        %p341 = pneg %p69
        %p342 = pneg %p66
        %s343 = sadd.s32 %s36, %s37
        %s344 = sld [smem:[#allocation4 + %s343]]
        %p345 = scmp.lt.s32.totalorder %s344, 0
        %s346 = scalar_select %p345, %s344, 0
        %s347 = smul.addr %s346, 8
        %s348 = scalar_lea.vmem %s3, %s347
        %p349 = pneg %p99
        %p350 = pneg %p96
        %s351 = sadd.s32 %s36, %s37
        %s352 = sld [smem:[#allocation3 + %s351]]
        %p353 = scmp.lt.s32.totalorder %s352, 0
        %s354 = scalar_select %p353, %s352, 0
        %s355 = smul.addr %s354, 8
        %s356 = scalar_lea.vmem %s4, %s355
        %p357 = pneg %p129
        %p358 = pneg %p126
        %s359 = sadd.s32 %s36, %s37
        %s360 = sld [smem:[#allocation4 + %s359]]
        %p361 = scmp.lt.s32.totalorder %s360, 0
        %s362 = scalar_select %p361, %s360, 0
        %s363 = scalar_lea.vmem %s5, %s362
        %p364 = pneg %p159
        %p365 = pneg %p156
        %s366 = sadd.s32 %s36, %s37
        %s367 = sld [smem:[#allocation3 + %s366]]
        %p368 = scmp.lt.s32.totalorder %s367, 0
        %s369 = scalar_select %p368, %s367, 0
        %s370 = smul.addr %s369, 8
        %s371 = scalar_lea.vmem %s6, %s370
        %p372 = pneg %p189
        %p373 = pneg %p186
        %s374 = sadd.s32 %s36, %s37
        %s375 = sld [smem:[#allocation4 + %s374]]
        %p376 = scmp.lt.s32.totalorder %s375, 0
        %s377 = scalar_select %p376, %s375, 0
        %s378 = scalar_lea.vmem %s7, %s377
        %p379 = pneg %p219
        %p380 = pneg %p216
        %p381 = pneg %p245
        %p382 = pneg %p242
        %s383 = sand.u32 %s232, 1
        %s384 = scalar_lea.sflag [#allocation6], %s383
        %s385 = sand.u32 %s232, 1
        %s386 = smul.addr %s385, 8
        %s387 = scalar_lea.vmem [#allocation5], %s386
        %s388 = sadd.s32 %s36, %s37
        %s389 = sld [smem:[#allocation3 + %s388]]
        %p390 = scmp.lt.s32.totalorder %s389, 0
        %s391 = scalar_select %p390, %s389, 0
        %s392 = smul.addr %s391, 8
        %s393 = scalar_lea.vmem %s2, %s392
        %s394 = sadd.s32 %s36, %s37
        %s395 = sld [smem:[#allocation3 + %s394]]
        %s396 = sadd.s32 %s36, %s37
        %s397 = sld [smem:[#allocation4 + %s396]]
        %p398 = scmp.lt.s32.totalorder %s397, 0
        %s399 = scalar_select %p398, %s397, 0
        %s400 = smul.addr %s399, 8
        %s401 = scalar_lea.vmem %s3, %s400
        %s402 = sadd.s32 %s36, %s37
        %s403 = sld [smem:[#allocation4 + %s402]]
        %s404 = sadd.s32 %s36, %s37
        %s405 = sld [smem:[#allocation3 + %s404]]
        %p406 = scmp.lt.s32.totalorder %s405, 0
        %s407 = scalar_select %p406, %s405, 0
        %s408 = smul.addr %s407, 8
        %s409 = scalar_lea.vmem %s4, %s408
        %s410 = sadd.s32 %s36, %s37
        %s411 = sld [smem:[#allocation3 + %s410]]
        %s412 = sadd.s32 %s36, %s37
        %s413 = sld [smem:[#allocation4 + %s412]]
        %p414 = scmp.lt.s32.totalorder %s413, 0
        %s415 = scalar_select %p414, %s413, 0
        %s416 = scalar_lea.vmem %s5, %s415
        %s417 = sadd.s32 %s36, %s37
        %s418 = sld [smem:[#allocation4 + %s417]]
        %s419 = sadd.s32 %s36, %s37
        %s420 = sld [smem:[#allocation3 + %s419]]
        %p421 = scmp.lt.s32.totalorder %s420, 0
        %s422 = scalar_select %p421, %s420, 0
        %s423 = smul.addr %s422, 8
        %s424 = scalar_lea.vmem %s6, %s423
        %s425 = sadd.s32 %s36, %s37
        %s426 = sld [smem:[#allocation3 + %s425]]
        %s427 = sadd.s32 %s36, %s37
        %s428 = sld [smem:[#allocation4 + %s427]]
        %p429 = scmp.lt.s32.totalorder %s428, 0
        %s430 = scalar_select %p429, %s428, 0
        %s431 = scalar_lea.vmem %s7, %s430
        %s432 = sadd.s32 %s36, %s37
        %s433 = sld [smem:[#allocation4 + %s432]]
        %s434 = sadd.s32 %s36, %s37
        %p435 = scmp.eq.s32.totalorder %s37, 0
        // Predicated region
        $region45: #{tpu_custom_call.1} parent=43 // pred_check
          %p436 = pneg %p435
        $region46: #{tpu_custom_call.1} parent=43 // pred_check_branch
          %438 = sbr.rel (%p436) target = $region48
        $region47: #{tpu_custom_call.1} parent=43 // pred_region
          %vm439 = vcmask 64512
          %440 = vst.msk [vmem:[%s387] sm:$0xff] %vm439, 0.0
        $region48: #{tpu_custom_call.1} parent=43 // pred_fallthru
          _
        %s441 = sld [smem:[#allocation3 + %s434]]
        %s442 = sld [smem:[#allocation4 + %s434]]
        %p443 = scmp.lt.s32.totalorder %s434, 1
        // Predicated region
        $region49: #{tpu_custom_call.1} parent=43 // pred_check
          %p444 = pneg %p443
        $region50: #{tpu_custom_call.1} parent=43 // pred_check_branch
          %446 = sbr.rel (%p444) target = $region52
        $region51: #{tpu_custom_call.1} parent=43 // pred_region
          %v447 = vld [vmem:[%s393] sm:$0xff]
          %v448 = vld [vmem:[%s401] sm:$0xff]
          %449 = vmatprep.subr.mxu0 0.0
          %450 = vmatpush1.xpose.msra.mxu0 %v448
          %451 = vmatprep.subr.mxu0 0.0
          %452 = vmatpush1.xpose.msra.mxu0 0.0
          %453 = vmatprep.subr.mxu0 0.0
          %454 = vmatpush1.xpose.msra.mxu0 0.0
          %455 = vmatprep.subr.mxu0 0.0
          %456 = vmatpush1.xpose.msra.mxu0 0.0
          %457 = vmatprep.subr.mxu0 0.0
          %458 = vmatpush1.xpose.msra.mxu0 0.0
          %459 = vmatprep.subr.mxu0 0.0
          %460 = vmatpush1.xpose.msra.mxu0 0.0
          %461 = vmatprep.subr.mxu0 0.0
          %462 = vmatpush1.xpose.msra.mxu0 0.0
          %463 = vmatprep.subr.mxu0 0.0
          %464 = vmatpush1.xpose.msra.mxu0 0.0
          %465 = vmatprep.subr.mxu0 0.0
          %466 = vmatpush1.xpose.msra.mxu0 0.0
          %467 = vmatprep.subr.mxu0 0.0
          %468 = vmatpush1.xpose.msra.mxu0 0.0
          %469 = vmatprep.subr.mxu0 0.0
          %470 = vmatpush1.xpose.msra.mxu0 0.0
          %471 = vmatprep.subr.mxu0 0.0
          %472 = vmatpush1.xpose.msra.mxu0 0.0
          %473 = vmatprep.subr.mxu0 0.0
          %474 = vmatpush1.xpose.msra.mxu0 0.0
          %475 = vmatprep.subr.mxu0 0.0
          %476 = vmatpush1.xpose.msra.mxu0 0.0
          %477 = vmatprep.subr.mxu0 0.0
          %478 = vmatpush1.xpose.msra.mxu0 0.0
          %479 = vmatprep.subr.mxu0 0.0
          %480 = vmatpush1.xpose.msra.mxu0 0.0
          %481 = vmatprep.subr.mxu0 0.0
          %482 = vmatpush1.xpose.msra.mxu0 0.0
          %483 = vmatprep.subr.mxu0 0.0
          %484 = vmatpush1.xpose.msra.mxu0 0.0
          %485 = vmatprep.subr.mxu0 0.0
          %486 = vmatpush1.xpose.msra.mxu0 0.0
          %487 = vmatprep.subr.mxu0 0.0
          %488 = vmatpush1.xpose.msra.mxu0 0.0
          %489 = vmatprep.subr.mxu0 0.0
          %490 = vmatpush1.xpose.msra.mxu0 0.0
          %491 = vmatprep.subr.mxu0 0.0
          %492 = vmatpush1.xpose.msra.mxu0 0.0
          %493 = vmatprep.subr.mxu0 0.0
          %494 = vmatpush1.xpose.msra.mxu0 0.0
          %495 = vmatprep.subr.mxu0 0.0
          %496 = vmatpush1.xpose.msra.mxu0 0.0
          %497 = vmatprep.subr.mxu0 0.0
          %498 = vmatpush1.xpose.msra.mxu0 0.0
          %499 = vmatprep.subr.mxu0 0.0
          %500 = vmatpush1.xpose.msra.mxu0 0.0
          %501 = vmatprep.subr.mxu0 0.0
          %502 = vmatpush1.xpose.msra.mxu0 0.0
          %503 = vmatprep.subr.mxu0 0.0
          %504 = vmatpush1.xpose.msra.mxu0 0.0
          %505 = vmatprep.subr.mxu0 0.0
          %506 = vmatpush1.xpose.msra.mxu0 0.0
          %507 = vmatprep.subr.mxu0 0.0
          %508 = vmatpush1.xpose.msra.mxu0 0.0
          %509 = vmatprep.subr.mxu0 0.0
          %510 = vmatpush1.xpose.msra.mxu0 0.0
          %511 = vmatprep.subr.mxu0 0.0
          %512 = vmatpush1.xpose.msra.mxu0 0.0
          %513 = vmatprep.mubr.f32.mxu0 0.0
          %514 = vmatmul.mubr.f32.gmra.mrb[0].mxu0 %v447
          %v515 = vpop.f32.mrb[0].mxu0
          %v516 = vadd.f32 0.0, %v515
          %v517 = vpop.f32.mrb[0].mxu0
          %518 = vdwg.mxu0
          %v519 = vld [vmem:[%s424] sm:$0xff]
          %v520 = vld [vmem:[%s431] sm:$0x1]
          %522 = vset.pattern.permute.xlu0 0
          %523 = vperm.xlu0 %522, %v519
          %v524 = vpop.permute.xlu0 %523
          %v527 = vlaneseq
          %v528 = vshrl.u32 %v527, 7
          %v529 = vsub.s32 0, %v528
          %v530 = vrot.slane %v520, %v529
          %v532 = vadd.f32 %v524, %v530
          %v533 = vmul.f32 %v516, 2.0
          %v534 = vsub.f32 %v532, %v533
          %v535 = vmax.f32 %v534, 0.0
          %v536 = vld [vmem:[%s409] sm:$0xff]
          %v537 = vld [vmem:[%s416] sm:$0x1]
          %538 = vset.pattern.permute.xlu0 0
          %539 = vperm.xlu0 %538, %v536
          %v540 = vpop.permute.xlu0 %539
          %v541 = vlaneseq
          %v542 = vshrl.u32 %v541, 7
          %v543 = vsub.s32 0, %v542
          %v544 = vrot.slane %v537, %v543
          %vm545 = vcmp.eq.s32.totalorder %v540, %v544
          %v546 = vrsqrt.pop %v535
          %v547 = vmul.f32 %v535, %v546
          %vm548 = vcmp.eq.f32.partialorder %v535, inf
          %v549 = vsel %vm548, %v535, %v547
          %vm550 = vcmp.eq.f32.partialorder %v535, 0.0
          %v551 = vand.u32 %v535, 2147483648
          %v552 = vsel %vm550, %v551, %v549
          %v553 = vsub.f32 1.0, %v552
          %v554 = vmax.f32 %v553, 0.0
          %v555 = vmul.f32 %v554, %v554
          %v556 = vsel %vm545, %v535, %v555
          %s557 = smul.u32 %s442, 8
          %s558 = smul.u32 %s441, 8
          %s559 = sadd.s32 %s558, 8
          %p560 = scmp.lt.s32.totalorder %s557, %s559
          // Predicated region
          $region53: #{tpu_custom_call.1} parent=51 // pred_check
            %p561 = pneg %p560
          $region54: #{tpu_custom_call.1} parent=51 // pred_check_branch
            %563 = sbr.rel (%p561) target = $region56
          $region55: #{tpu_custom_call.1} parent=51 // pred_region
            %v564 = vlaneseq
            %v565 = vshrl.u32 %v564, 7
            %v566 = vstv %s558
            %v567 = vadd.s32 %v566, %v565
            %v568 = vlaneseq
            %v569 = vand.u32 %v568, 127
            %v570 = vstv %s557
            %v571 = vadd.s32 %v570, %v569
            %vm572 = vcmp.gt.s32.totalorder %v571, %v567
            %v573 = vsel %vm572, %v556, 0.0
            %v574 = vld [vmem:[%s387] sm:$0xff]
            %v575 = vadd.f32 %v573, 0.0
            %v576 = vadd.f32 %v574, %v575
            %vm577 = vcmask 64512
            %578 = vst.msk [vmem:[%s387] sm:$0xff] %vm577, %v576
          $region56: #{tpu_custom_call.1} parent=51 // pred_fallthru
            _
          %p579 = scmp.ge.s32.totalorder %s557, %s559
          // Predicated region
          $region57: #{tpu_custom_call.1} parent=51 // pred_check
            %p580 = pneg %p579
          $region58: #{tpu_custom_call.1} parent=51 // pred_check_branch
            %582 = sbr.rel (%p580) target = $region60
          $region59: #{tpu_custom_call.1} parent=51 // pred_region
            %v583 = vld [vmem:[%s387] sm:$0xff]
            %v584 = vadd.f32 %v556, 0.0
            %v585 = vadd.f32 %v583, %v584
            %vm586 = vcmask 64512
            %587 = vst.msk [vmem:[%s387] sm:$0xff] %vm586, %v585
          $region60: #{tpu_custom_call.1} parent=51 // pred_fallthru
            _
        $region52: #{tpu_custom_call.1} parent=43 // pred_fallthru
          _
        %s588 = sand.u32 %s232, 1
        %s589 = scalar_lea.sflag [#allocation6], %s588
        %s590 = sand.u32 %s232, 1
        %s591 = smul.addr %s590, 8
        %s592 = scalar_lea.vmem [#allocation5], %s591
        // Predicated region
        $region61: #{tpu_custom_call.1} parent=43 // pred_check
          %p593 = pneg %p242
        $region62: #{tpu_custom_call.1} parent=43 // pred_check_branch
          %595 = sbr.rel (%p593) target = $region64
        $region63: #{tpu_custom_call.1} parent=43 // pred_region
          %s597 = ssub.s32 128, 128
          %598 = vsyncadd %s589, %s597
          %s599 = smul.addr %s36, 128
          %s600 = scalar_lea.hbm %s8, %s599
          %s602 = sshll.u32 %s592, 4
          %s603 = int_to_ptr.vmem [resolvable:$true] %s602
          %605 = dma.vmem_to_hbm [thread:$0]  %s603, 128, %s600, %s589
        $region64: #{tpu_custom_call.1} parent=43 // pred_fallthru
          _
      $region44: #{tpu_custom_call.1} parent=5 // pred_fallthru
        _
      %p606 = scmp.le.s32.totalorder 2, %s27
      // Predicated region
      $region65: #{tpu_custom_call.1} parent=5 // pred_check
        %p607 = pneg %p606
      $region66: #{tpu_custom_call.1} parent=5 // pred_check_branch
        %609 = sbr.rel (%p607) target = $region68
      $region67: #{tpu_custom_call.1} parent=5 // pred_region
        %s610 = ssub.s32 %s27, 2
        // Predicated region
        $region69: #{tpu_custom_call.1} parent=67 // pred_check
          %p611 = pneg %p248
        $region70: #{tpu_custom_call.1} parent=67 // pred_check_branch
          %613 = sbr.rel (%p611) target = $region72
        $region71: #{tpu_custom_call.1} parent=67 // pred_region
          %s614 = sand.u32 %s233, 1
          %s615 = scalar_lea.sflag [#allocation6], %s614
          %s616 = sand.u32 %s233, 1
          %s617 = smul.addr %s616, 8
          %s618 = scalar_lea.vmem [#allocation5], %s617
          %619 = dma.done %s615, 128
        $region72: #{tpu_custom_call.1} parent=67 // pred_fallthru
          _
      $region68: #{tpu_custom_call.1} parent=5 // pred_fallthru
        _
    $region6: #{tpu_custom_call.1} parent=1 // loop_footer
      %s31 = sadd.s32 1, %s27
    $region7: #{tpu_custom_call.1} parent=1 // loop_footer_branch
      %26 = sbr.rel target = $region3
    $region8: #{tpu_custom_call.1} parent=1 // loop_exit
      _
    %620 = vsyncpa [#allocation6], 1
    %s621 = scalar_lea.sflag [#allocation6], 1
    %622 = vsyncpa %s621, 1

</llo_original>
